<compile_context>
chip_gen: v7x
topology: tpu7x:2x2x1
jax: 0.10.0
libtpu: 0.0.40
codegen_flags: <defaults>
</compile_context>

<pallas_src>
import functools
import inspect

import jax
import jax.numpy as jnp
from jax.experimental import pallas as pl
from jax.experimental.pallas import tpu as pltpu


def focal_loss_kernel(n_ref, logits_ref, labels_ref, alpha_ref,
                      psum_ref, pmax_ref, sum_acc, max_acc, *,
                      gamma, tm, spc):
    core = pl.program_id(0)          # parallel axis (TensorCore split)
    step = pl.program_id(1)          # sequential row-tile axis

    @pl.when(step == 0)
    def _init():
        sum_acc[...] = jnp.zeros_like(sum_acc)
        max_acc[...] = jnp.full_like(max_acc, -jnp.inf)

    logits = logits_ref[...].astype(jnp.float32)        # (tm, C)
    labels = labels_ref[...]                            # (tm, 1) int32
    alpha = alpha_ref[...].astype(jnp.float32)          # (1, C)
    n_rows, c = logits.shape

    # Numerically-stable logsumexp along the class (lane) axis.
    m = jnp.max(logits, axis=-1, keepdims=True)
    lse = m + jnp.log(jnp.sum(jnp.exp(logits - m), axis=-1, keepdims=True))

    # One-hot select of the target logit and its class weight via masked lane
    # reductions (no full-tile logp temporary, no gather).
    class_ids = jax.lax.broadcasted_iota(jnp.int32, (n_rows, c), 1)
    onehot = class_ids == labels                         # (tm, C) bool
    logit_y = jnp.sum(jnp.where(onehot, logits, 0.0), axis=-1, keepdims=True)
    alpha_y = jnp.sum(jnp.where(onehot, alpha, 0.0), axis=-1, keepdims=True)

    ce = -alpha_y * (logit_y - lse)                      # (tm, 1) weighted CE
    pt = jnp.exp(-ce)
    omp = 1.0 - pt                                       # 1 - pt

    # Mask rows beyond the true batch size (ragged last tile / clamped blocks).
    row_start = (core * spc + step) * tm
    row_ids = row_start + jax.lax.broadcasted_iota(jnp.int32, (n_rows, 1), 0)
    valid = row_ids < n_ref[0]

    if gamma == 2.0:                                     # static specialisation
        pw = omp * omp                                   # VPU multiplies, no pow
    else:
        pw = omp ** gamma

    # Vector-shaped accumulators: element-wise per step, reduce only at finalize.
    sum_acc[...] += jnp.where(valid, pw * ce, 0.0)
    max_acc[...] = jnp.maximum(max_acc[...], jnp.where(valid, omp, -jnp.inf))

    @pl.when(step == spc - 1)
    def _finalize():
        psum_ref[...] = jnp.sum(sum_acc[...], keepdims=True).reshape(1, 1, 1)
        pmax_ref[...] = jnp.max(max_acc[...], keepdims=True).reshape(1, 1, 1)


def focal_loss(logits, labels, alpha, gamma=2.0, weight=1.0, reduction='mean'):
    n, c = logits.shape
    dtype_bytes = jnp.dtype(logits.dtype).itemsize

    # ---- generation-aware VMEM budget (v7x: 64 MiB physical) ---------------
    try:
        vmem_cap = int(pltpu.get_tpu_info().vmem_capacity_bytes)
    except Exception:
        vmem_cap = 64 * 1024 * 1024                      # conservative fallback
    vmem_limit = min(vmem_cap * 3 // 4, 96 * 1024 * 1024)

    # ---- row tile: target ~2 MiB of streamed logits per step, VMEM-capped --
    target_block_bytes = 2 * 1024 * 1024
    tm = target_block_bytes // max(1, c * dtype_bytes)
    tm = max(8, (tm // 8) * 8)
    tm = min(tm, 4096)                                   # keep (tm,1) accumulators small
    # double-buffered input block + ~3 full-tile f32 temps + 2 (tm,1) f32 accs
    per_row_bytes = c * (2 * dtype_bytes + 3 * 4) + 2 * 128 * 4
    max_tm = max(8, ((vmem_limit // 2) // per_row_bytes) // 8 * 8)
    tm = min(tm, max_tm)
    if n >= 8:
        tm = min(tm, (n // 8) * 8)                       # multiple of 8, <= n
    else:
        tm = n                                           # block == full row dim (allowed)

    total_blocks = -(-n // tm)
    ncores = 2 if total_blocks >= 2 else 1               # both TCs on v7x; harmless on 1-TC chips
    spc = -(-total_blocks // ncores)                     # sequential steps per core
    last_blk = total_blocks - 1

    def row_map(c_idx, i, n_ref):
        # Clamp so a core whose tail blocks run past the end reads a valid
        # (but fully row-masked) block.
        return (jnp.minimum(c_idx * spc + i, last_blk), 0)

    def out_map(c_idx, i, n_ref):
        return (c_idx, 0, 0)

    # Optional 3-deep buffering when per-step blocks are small and the
    # sequential loop is long enough to benefit (guarded for API availability).
    logits_spec_kwargs = {}
    try:
        if (hasattr(pl, "Buffered")
                and "pipeline_mode" in inspect.signature(pl.BlockSpec).parameters
                and tm * c * dtype_bytes < (1 << 20) and spc >= 4):
            logits_spec_kwargs["pipeline_mode"] = pl.Buffered(3)
    except Exception:
        pass

    kernel = functools.partial(focal_loss_kernel, gamma=gamma, tm=tm, spc=spc)

    part_sum, part_max = pl.pallas_call(
        kernel,
        out_shape=(jax.ShapeDtypeStruct((ncores, 1, 1), jnp.float32),
                   jax.ShapeDtypeStruct((ncores, 1, 1), jnp.float32)),
        grid_spec=pltpu.PrefetchScalarGridSpec(
            num_scalar_prefetch=1,                       # n (batch size) in SMEM
            grid=(ncores, spc),
            in_specs=[pl.BlockSpec((tm, c), row_map, **logits_spec_kwargs),
                      pl.BlockSpec((tm, 1), row_map),
                      pl.BlockSpec((1, c), lambda c_idx, i, n_ref: (0, 0))],
            out_specs=(pl.BlockSpec((1, 1, 1), out_map),
                       pl.BlockSpec((1, 1, 1), out_map)),
            scratch_shapes=[pltpu.VMEM((tm, 1), jnp.float32),   # per-row partial sums
                            pltpu.VMEM((tm, 1), jnp.float32)],  # per-row partial max(1-pt)
        ),
        compiler_params=pltpu.CompilerParams(
            dimension_semantics=("parallel", "arbitrary"),
            vmem_limit_bytes=int(vmem_limit)),
    )(jnp.array([n], jnp.int32),
      logits,                                            # native dtype, no padding copy
      labels.astype(jnp.int32).reshape(n, 1),
      alpha.astype(jnp.float32).reshape(1, c))

    # Tiny scalar epilogue: combine per-core partials, apply the argmin-derived
    # scalar factor and the reduction.  (Negligible cost; avoids cross-core sync.)
    total = jnp.sum(part_sum)
    max_o = jnp.max(part_max)                            # == max(1 - pt) == 1 - pt[argmin(pt)]
    max_n = max_o * max_o if gamma == 2.0 else max_o ** gamma
    loss = weight * (max_o / max_n) * total
    if reduction == 'mean':
        loss = loss / n
    return loss


def focal_loss_ref(logits, labels, alpha, gamma=2.0, weight=1.0, reduction='mean'):
    """Pure-JAX reference mirroring the PyTorch module."""
    logp = jax.nn.log_softmax(logits.astype(jnp.float32), axis=-1)
    logp_y = jnp.take_along_axis(logp, labels[:, None], axis=-1)[:, 0]
    alpha_y = alpha[labels]
    ce = -alpha_y * logp_y
    pt = jnp.exp(-ce)
    idx = jnp.argmin(pt)
    max_o = 1.0 - pt[idx]
    wts = (1.0 - pt) ** gamma
    max_n = wts[idx]
    wts = weight * wts * max_o / max_n
    fl = wts * ce
    return jnp.mean(fl) if reduction == 'mean' else jnp.sum(fl)


if __name__ == "__main__":
    key = jax.random.PRNGKey(0)

    def run_case(n, c, gamma, weight, reduction, k):
        k1, k2, k3 = jax.random.split(k, 3)
        logits = jax.random.normal(k1, (n, c), dtype=jnp.float32)
        labels = jax.random.randint(k2, (n,), 0, c, dtype=jnp.int32)
        alpha = 0.5 + jax.random.uniform(k3, (c,), dtype=jnp.float32)
        out = jax.block_until_ready(
            focal_loss(logits, labels, alpha, gamma=gamma, weight=weight,
                       reduction=reduction))
        ref = focal_loss_ref(logits, labels, alpha, gamma=gamma, weight=weight,
                             reduction=reduction)
        assert jnp.allclose(out, ref, rtol=1e-4, atol=1e-5), (n, c, out, ref)

    k1, k2, k3 = jax.random.split(key, 3)
    run_case(8, 16, 2.0, 1.0, 'mean', k1)     # single tile, single core
    run_case(300, 21, 2.0, 1.0, 'mean', k2)   # ragged last tile + 2-way core split
    run_case(64, 10, 3.0, 0.5, 'sum', k3)     # non-default gamma/weight, 'sum' reduction

    print("KERNEL_OK")
</pallas_src>

<mosaic_0001>
module attributes {stable_mosaic.version = 11 : i64} {
  func.func @focal_loss_kernel(%arg0: i32, %arg1: i32, %arg2: memref<1xi32, #tpu.memory_space<smem>>, %arg3: memref<8x16xf32, #tpu.memory_space<vmem>>, %arg4: memref<8x1xi32, #tpu.memory_space<vmem>>, %arg5: memref<1x16xf32, #tpu.memory_space<vmem>>, %arg6: memref<1x1x1xf32, #tpu.memory_space<vmem>>, %arg7: memref<1x1x1xf32, #tpu.memory_space<vmem>>, %arg8: memref<8x1xf32, #tpu.memory_space<vmem>>, %arg9: memref<8x1xf32, #tpu.memory_space<vmem>>) attributes {dimension_semantics = [#tpu.dimension_semantics<parallel>, #tpu.dimension_semantics<arbitrary>], iteration_bounds = array<i64: 1, 1>, scalar_prefetch = 1 : i64, scratch_operands = 2 : i64, tpu.core_type = #tpu.core_type<tc>, window_params = [{transform_indices = @transform_0, window_bounds = array<i64: 8, 16>}, {transform_indices = @transform_1, window_bounds = array<i64: 8, 1>}, {pipeline_mode = #tpu.pipeline_mode<synchronous>, transform_indices = @transform_2, window_bounds = array<i64: 1, 16>}, {transform_indices = @transform_3, window_bounds = array<i64: 1, 1, 1>}, {transform_indices = @transform_4, window_bounds = array<i64: 1, 1, 1>}]} {
    %c0_i32 = arith.constant 0 : i32
    %0 = arith.cmpi eq, %arg1, %c0_i32 : i32
    %1 = arith.extui %0 : i1 to i32
    %c0_i32_0 = arith.constant 0 : i32
    %2 = arith.cmpi ne, %1, %c0_i32_0 : i32
    scf.if %2 {
      %cst_27 = arith.constant 0.000000e+00 : f32
      %61 = vector.broadcast %cst_27 : f32 to vector<8x1xf32>
      %c0_28 = arith.constant 0 : index
      %c0_29 = arith.constant 0 : index
      %62 = vector.load %arg8[%c0_28, %c0_29] : memref<8x1xf32, #tpu.memory_space<vmem>>, vector<8x1xf32>
      tpu.vector_store %arg8[%c0_28, %c0_29], %61 {strides = array<i32>} : memref<8x1xf32, #tpu.memory_space<vmem>>, vector<8x1xf32>,
      %cst_30 = arith.constant 0xFF800000 : f32
      %63 = vector.broadcast %cst_30 : f32 to vector<8x1xf32>
      %c0_31 = arith.constant 0 : index
      %c0_32 = arith.constant 0 : index
      %64 = vector.load %arg9[%c0_31, %c0_32] : memref<8x1xf32, #tpu.memory_space<vmem>>, vector<8x1xf32>
      tpu.vector_store %arg9[%c0_31, %c0_32], %63 {strides = array<i32>} : memref<8x1xf32, #tpu.memory_space<vmem>>, vector<8x1xf32>,
    } else {
    }
    %c0 = arith.constant 0 : index
    %c0_1 = arith.constant 0 : index
    %3 = vector.load %arg3[%c0, %c0_1] : memref<8x16xf32, #tpu.memory_space<vmem>>, vector<8x16xf32>
    %c0_2 = arith.constant 0 : index
    %c0_3 = arith.constant 0 : index
    %4 = vector.load %arg4[%c0_2, %c0_3] : memref<8x1xi32, #tpu.memory_space<vmem>>, vector<8x1xi32>
    %c0_4 = arith.constant 0 : index
    %c0_5 = arith.constant 0 : index
    %5 = vector.load %arg5[%c0_4, %c0_5] : memref<1x16xf32, #tpu.memory_space<vmem>>, vector<1x16xf32>
    %cst = arith.constant dense<0xFF800000> : vector<8xf32>
    %6 = vector.multi_reduction <maximumf>, %3, %cst [1] : vector<8x16xf32> to vector<8xf32>
    %7 = vector.shape_cast %6 : vector<8xf32> to vector<8x1xf32>
    %8 = vector.broadcast %7 : vector<8x1xf32> to vector<8x16xf32>
    %9 = arith.subf %3, %8 : vector<8x16xf32>
    %10 = math.exp %9 : vector<8x16xf32>
    %cst_6 = arith.constant dense<0.000000e+00> : vector<8xf32>
    %11 = vector.multi_reduction <add>, %10, %cst_6 [1] : vector<8x16xf32> to vector<8xf32>
    %12 = vector.shape_cast %11 : vector<8xf32> to vector<8x1xf32>
    %13 = math.log %12 : vector<8x1xf32>
    %14 = arith.addf %7, %13 : vector<8x1xf32>
    %15 = tpu.iota {dimensions = array<i32: 1>} : vector<8x16xi32>
    %16 = vector.broadcast %4 : vector<8x1xi32> to vector<8x16xi32>
    %17 = arith.cmpi eq, %15, %16 : vector<8x16xi32>
    %cst_7 = arith.constant 0.000000e+00 : f32
    %18 = vector.broadcast %cst_7 : f32 to vector<8x16xf32>
    %19 = arith.select %17, %3, %18 : vector<8x16xi1>, vector<8x16xf32>
    %cst_8 = arith.constant dense<0.000000e+00> : vector<8xf32>
    %20 = vector.multi_reduction <add>, %19, %cst_8 [1] : vector<8x16xf32> to vector<8xf32>
    %21 = vector.shape_cast %20 : vector<8xf32> to vector<8x1xf32>
    %cst_9 = arith.constant 0.000000e+00 : f32
    %22 = vector.shape_cast %5 : vector<1x16xf32> to vector<1x16xf32>
    %23 = vector.broadcast %22 : vector<1x16xf32> to vector<8x16xf32>
    %24 = vector.broadcast %cst_9 : f32 to vector<8x16xf32>
    %25 = arith.select %17, %23, %24 : vector<8x16xi1>, vector<8x16xf32>
    %cst_10 = arith.constant dense<0.000000e+00> : vector<8xf32>
    %26 = vector.multi_reduction <add>, %25, %cst_10 [1] : vector<8x16xf32> to vector<8xf32>
    %27 = vector.shape_cast %26 : vector<8xf32> to vector<8x1xf32>
    %cst_11 = arith.constant 0.000000e+00 : f32
    %28 = vector.broadcast %cst_11 : f32 to vector<8x1xf32>
    %29 = arith.subf %28, %27 : vector<8x1xf32>
    %30 = arith.subf %21, %14 : vector<8x1xf32>
    %31 = arith.mulf %29, %30 : vector<8x1xf32>
    %cst_12 = arith.constant 0.000000e+00 : f32
    %32 = vector.broadcast %cst_12 : f32 to vector<8x1xf32>
    %33 = arith.subf %32, %31 : vector<8x1xf32>
    %34 = math.exp %33 : vector<8x1xf32>
    %cst_13 = arith.constant 1.000000e+00 : f32
    %35 = vector.broadcast %cst_13 : f32 to vector<8x1xf32>
    %36 = arith.subf %35, %34 : vector<8x1xf32>
    %c1_i32 = arith.constant 1 : i32
    %37 = arith.muli %arg0, %c1_i32 : i32
    %38 = arith.addi %37, %arg1 : i32
    %c8_i32 = arith.constant 8 : i32
    %39 = arith.muli %38, %c8_i32 : i32
    %40 = tpu.iota {dimensions = array<i32: 0>} : vector<8x1xi32>
    %41 = vector.broadcast %39 : i32 to vector<8x1xi32>
    %42 = arith.addi %41, %40 : vector<8x1xi32>
    %c0_14 = arith.constant 0 : index
    %43 = memref.load %arg2[%c0_14] : memref<1xi32, #tpu.memory_space<smem>>
    %44 = vector.broadcast %43 : i32 to vector<8x1xi32>
    %45 = arith.cmpi slt, %42, %44 : vector<8x1xi32>
    %46 = arith.mulf %36, %36 : vector<8x1xf32>
    %c0_15 = arith.constant 0 : index
    %c0_16 = arith.constant 0 : index
    %47 = vector.load %arg8[%c0_15, %c0_16] : memref<8x1xf32, #tpu.memory_space<vmem>>, vector<8x1xf32>
    %48 = arith.mulf %46, %31 : vector<8x1xf32>
    %cst_17 = arith.constant 0.000000e+00 : f32
    %49 = vector.broadcast %cst_17 : f32 to vector<8x1xf32>
    %50 = arith.select %45, %48, %49 : vector<8x1xi1>, vector<8x1xf32>
    %51 = arith.addf %47, %50 : vector<8x1xf32>
    %c0_18 = arith.constant 0 : index
    %c0_19 = arith.constant 0 : index
    %52 = vector.load %arg8[%c0_18, %c0_19] : memref<8x1xf32, #tpu.memory_space<vmem>>, vector<8x1xf32>
    tpu.vector_store %arg8[%c0_18, %c0_19], %51 {strides = array<i32>} : memref<8x1xf32, #tpu.memory_space<vmem>>, vector<8x1xf32>,
    %c0_20 = arith.constant 0 : index
    %c0_21 = arith.constant 0 : index
    %53 = vector.load %arg9[%c0_20, %c0_21] : memref<8x1xf32, #tpu.memory_space<vmem>>, vector<8x1xf32>
    %cst_22 = arith.constant 0xFF800000 : f32
    %54 = vector.broadcast %cst_22 : f32 to vector<8x1xf32>
    %55 = arith.select %45, %36, %54 : vector<8x1xi1>, vector<8x1xf32>
    %56 = arith.maximumf %53, %55 : vector<8x1xf32>
    %c0_23 = arith.constant 0 : index
    %c0_24 = arith.constant 0 : index
    %57 = vector.load %arg9[%c0_23, %c0_24] : memref<8x1xf32, #tpu.memory_space<vmem>>, vector<8x1xf32>
    tpu.vector_store %arg9[%c0_23, %c0_24], %56 {strides = array<i32>} : memref<8x1xf32, #tpu.memory_space<vmem>>, vector<8x1xf32>,
    %c0_i32_25 = arith.constant 0 : i32
    %58 = arith.cmpi eq, %arg1, %c0_i32_25 : i32
    %59 = arith.extui %58 : i1 to i32
    %c0_i32_26 = arith.constant 0 : i32
    %60 = arith.cmpi ne, %59, %c0_i32_26 : i32
    scf.if %60 {
      %c0_27 = arith.constant 0 : index
      %c0_28 = arith.constant 0 : index
      %61 = vector.load %arg8[%c0_27, %c0_28] : memref<8x1xf32, #tpu.memory_space<vmem>>, vector<8x1xf32>
      %62 = vector.shape_cast %61 : vector<8x1xf32> to vector<1x8x1xf32>
      %cst_29 = arith.constant dense<0.000000e+00> : vector<1xf32>
      %63 = vector.multi_reduction <add>, %62, %cst_29 [1, 2] : vector<1x8x1xf32> to vector<1xf32>
      %64 = vector.shape_cast %63 : vector<1xf32> to vector<1x1x1xf32>
      %65 = vector.extract %64[0, 0, 0] : f32 from vector<1x1x1xf32>
      %66 = vector.broadcast %65 : f32 to vector<1x1xf32>
      %67 = vector.shape_cast %66 : vector<1x1xf32> to vector<1x1x1xf32>
      %c0_30 = arith.constant 0 : index
      %c0_31 = arith.constant 0 : index
      %c0_32 = arith.constant 0 : index
      %68 = vector.load %arg6[%c0_30, %c0_31, %c0_32] : memref<1x1x1xf32, #tpu.memory_space<vmem>>, vector<1x1x1xf32>
      tpu.vector_store %arg6[%c0_30, %c0_31, %c0_32], %67 {strides = array<i32>} : memref<1x1x1xf32, #tpu.memory_space<vmem>>, vector<1x1x1xf32>,
      %c0_33 = arith.constant 0 : index
      %c0_34 = arith.constant 0 : index
      %69 = vector.load %arg9[%c0_33, %c0_34] : memref<8x1xf32, #tpu.memory_space<vmem>>, vector<8x1xf32>
      %70 = vector.shape_cast %69 : vector<8x1xf32> to vector<1x8x1xf32>
      %cst_35 = arith.constant dense<0xFF800000> : vector<1xf32>
      %71 = vector.multi_reduction <maximumf>, %70, %cst_35 [1, 2] : vector<1x8x1xf32> to vector<1xf32>
      %72 = vector.shape_cast %71 : vector<1xf32> to vector<1x1x1xf32>
      %73 = vector.extract %72[0, 0, 0] : f32 from vector<1x1x1xf32>
      %74 = vector.broadcast %73 : f32 to vector<1x1xf32>
      %75 = vector.shape_cast %74 : vector<1x1xf32> to vector<1x1x1xf32>
      %c0_36 = arith.constant 0 : index
      %c0_37 = arith.constant 0 : index
      %c0_38 = arith.constant 0 : index
      %76 = vector.load %arg7[%c0_36, %c0_37, %c0_38] : memref<1x1x1xf32, #tpu.memory_space<vmem>>, vector<1x1x1xf32>
      tpu.vector_store %arg7[%c0_36, %c0_37, %c0_38], %75 {strides = array<i32>} : memref<1x1x1xf32, #tpu.memory_space<vmem>>, vector<1x1x1xf32>,
    } else {
    }
    return
  }
  func.func @transform_0(%arg0: i32, %arg1: i32, %arg2: memref<1xi32, #tpu.memory_space<smem>>) -> (i32, i32) {
    %c1_i32 = arith.constant 1 : i32
    %0 = arith.muli %arg0, %c1_i32 : i32
    %1 = arith.addi %0, %arg1 : i32
    %c0_i32 = arith.constant 0 : i32
    %2 = arith.minsi %1, %c0_i32 : i32
    %c0_i32_0 = arith.constant 0 : i32
    %c0_i32_1 = arith.constant 0 : i32
    return %2, %c0_i32_0 : i32, i32
  }
  func.func @transform_1(%arg0: i32, %arg1: i32, %arg2: memref<1xi32, #tpu.memory_space<smem>>) -> (i32, i32) {
    %c1_i32 = arith.constant 1 : i32
    %0 = arith.muli %arg0, %c1_i32 : i32
    %1 = arith.addi %0, %arg1 : i32
    %c0_i32 = arith.constant 0 : i32
    %2 = arith.minsi %1, %c0_i32 : i32
    %c0_i32_0 = arith.constant 0 : i32
    %c0_i32_1 = arith.constant 0 : i32
    return %2, %c0_i32_0 : i32, i32
  }
  func.func @transform_2(%arg0: i32, %arg1: i32, %arg2: memref<1xi32, #tpu.memory_space<smem>>) -> (i32, i32) {
    %c0_i32 = arith.constant 0 : i32
    %c0_i32_0 = arith.constant 0 : i32
    %c0_i32_1 = arith.constant 0 : i32
    return %c0_i32, %c0_i32_0 : i32, i32
  }
  func.func @transform_3(%arg0: i32, %arg1: i32, %arg2: memref<1xi32, #tpu.memory_space<smem>>) -> (i32, i32, i32) {
    %c0_i32 = arith.constant 0 : i32
    %c0_i32_0 = arith.constant 0 : i32
    %c0_i32_1 = arith.constant 0 : i32
    return %arg0, %c0_i32, %c0_i32_0 : i32, i32, i32
  }
  func.func @transform_4(%arg0: i32, %arg1: i32, %arg2: memref<1xi32, #tpu.memory_space<smem>>) -> (i32, i32, i32) {
    %c0_i32 = arith.constant 0 : i32
    %c0_i32_0 = arith.constant 0 : i32
    %c0_i32_1 = arith.constant 0 : i32
    return %arg0, %c0_i32, %c0_i32_0 : i32, i32, i32
  }
}

</mosaic_0001>

<llo_original>
// kernel: tpu_custom_call.1
$region0: #{tpu_custom_call.1}
  #allocation0 [shape = 'u32[]', space=smem, size = 0x4, offset = 0x4, fixed_abs, tag = 'smem constant byte address 0x4 - core index']
  #allocation1 [shape = 'u32[144,128]{1,0:T(1,128)}', space=vmem, size = 0x12000, scoped, tag = 'internal scratch']
  #allocation2 [shape = 'f32[8,1]{1,0:T(8,128)}', space=vmem, size = 0x1000, scoped, tag = 'scratch operand']
  #allocation3 [shape = 'f32[8,1]{1,0:T(8,128)}', space=vmem, size = 0x1000, scoped, tag = 'scratch operand']
  #allocation4 [shape = 's32[1]{0}', space=sflag, size = 0x4, scoped, tag = 'scoped memory for tpu_custom_call.1']
  #allocation5 [shape = 's32[1]{0:T(128)S(6)}', space=smem, size = 0x200, scoped, tag = 'prefetched SMEM operand 0']
  %s0 = inlined_call_operand.<no memory space> [shape: s32[1], index: 0, kind: input, shape index: {}]
  %s1 = inlined_call_operand.vmem [shape: f32[8,16], index: 1, kind: input, shape index: {}]
  %s2 = inlined_call_operand.vmem [shape: s32[8,1], index: 2, kind: input, shape index: {}]
  %s3 = inlined_call_operand.vmem [shape: f32[1,16], index: 3, kind: input, shape index: {}]
  %s4 = inlined_call_operand.hbm [shape: f32[1,1,1], index: 4, kind: output, shape index: {0}]
  %s5 = inlined_call_operand.hbm [shape: f32[1,1,1], index: 5, kind: output, shape index: {1}]
  %6 = xla_tuple %s4, %s5
  %s7 = sld [smem:[#allocation0]]
  $region38: #{tpu_custom_call.1} parent=0
    _
  %s9 = ssub.s32 1, %s7
  %s10 = scalar_select 0, %s9, %s7
  %11 = sst [smem:[#allocation5]] %s0
  $region1: #{tpu_custom_call.1} parent=0
    #allocation6 [shape = 'u8[512]{0}', space=vmem, size = 0x400, scoped, tag = 'output window, operand 0, single buffered']
    #allocation7 [shape = 's32[1]{0}', space=sflag, size = 0x4, scoped, tag = 'scoped memory for tpu_custom_call.1']
    #allocation8 [shape = 'u8[512]{0}', space=vmem, size = 0x400, scoped, tag = 'output window, operand 1, single buffered']
    #allocation9 [shape = 's32[1]{0}', space=sflag, size = 0x4, scoped, tag = 'scoped memory for tpu_custom_call.1']
    %12 = vsyncpa [#allocation7], 0
    %13 = vsyncpa [#allocation9], 0
    // Predicated region
    $region2: #{tpu_custom_call.1} parent=1 // pred_check
      _
    $region3: #{tpu_custom_call.1} parent=1 // pred_check_branch
      %15 = sbr.rel (0) target = $region5
    $region4: #{tpu_custom_call.1} parent=1 // pred_region
      %s16 = sadd.s32 0, 0
      %p17 = scmp.lt.s32.totalorder %s16, 0
      %s18 = scalar_select %p17, %s16, 0
      %p19 = scmp.lt.s32.totalorder %s18, 0
      %s20 = scalar_select %p19, %s18, 0
      %s21 = smul.addr %s20, 8
      %s22 = scalar_lea.vmem %s1, %s21
      %s23 = sadd.s32 0, 0
      %p24 = scmp.lt.s32.totalorder %s23, 0
      %s25 = scalar_select %p24, %s23, 0
    $region5: #{tpu_custom_call.1} parent=1 // pred_fallthru
      _
    // Predicated region
    $region6: #{tpu_custom_call.1} parent=1 // pred_check
      _
    $region7: #{tpu_custom_call.1} parent=1 // pred_check_branch
      %27 = sbr.rel (0) target = $region9
    $region8: #{tpu_custom_call.1} parent=1 // pred_region
      %s28 = sadd.s32 0, 0
      %p29 = scmp.lt.s32.totalorder %s28, 0
      %s30 = scalar_select %p29, %s28, 0
      %p31 = scmp.lt.s32.totalorder %s30, 0
      %s32 = scalar_select %p31, %s30, 0
      %s33 = smul.addr %s32, 8
      %s34 = scalar_lea.vmem %s2, %s33
      %s35 = sadd.s32 0, 0
      %p36 = scmp.lt.s32.totalorder %s35, 0
      %s37 = scalar_select %p36, %s35, 0
    $region9: #{tpu_custom_call.1} parent=1 // pred_fallthru
      _
    // Predicated region
    $region10: #{tpu_custom_call.1} parent=1 // pred_check
      _
    $region11: #{tpu_custom_call.1} parent=1 // pred_check_branch
      %39 = sbr.rel (0) target = $region13
    $region12: #{tpu_custom_call.1} parent=1 // pred_region
      _
    $region13: #{tpu_custom_call.1} parent=1 // pred_fallthru
      _
    %s40 = sadd.s32 0, 0
    %p41 = scmp.lt.s32.totalorder %s40, 0
    %s42 = scalar_select %p41, %s40, 0
    %p43 = scmp.lt.s32.totalorder %s42, 0
    %s44 = scalar_select %p43, %s42, 0
    %s45 = smul.addr %s44, 8
    %s46 = scalar_lea.vmem %s1, %s45
    %s47 = sadd.s32 0, 0
    %p48 = scmp.lt.s32.totalorder %s47, 0
    %s49 = scalar_select %p48, %s47, 0
    %p50 = scmp.lt.s32.totalorder %s49, 0
    %s51 = scalar_select %p50, %s49, 0
    %s52 = smul.addr %s51, 8
    %s53 = scalar_lea.vmem %s2, %s52
    %s54 = sadd.s32 0, 0
    %p55 = scmp.lt.s32.totalorder %s54, 0
    %s56 = scalar_select %p55, %s54, 0
    %p57 = scmp.lt.s32.totalorder %s56, 0
    %s58 = scalar_select %p57, %s56, 0
    %s59 = smul.addr %s58, 8
    %s60 = scalar_lea.vmem %s1, %s59
    %s61 = sadd.s32 0, 0
    %p62 = scmp.lt.s32.totalorder %s61, 0
    %s63 = scalar_select %p62, %s61, 0
    %s64 = sadd.s32 0, 0
    %p65 = scmp.lt.s32.totalorder %s64, 0
    %s66 = scalar_select %p65, %s64, 0
    %p67 = scmp.lt.s32.totalorder %s66, 0
    %s68 = scalar_select %p67, %s66, 0
    %s69 = smul.addr %s68, 8
    %s70 = scalar_lea.vmem %s2, %s69
    %s71 = sadd.s32 0, 0
    %p72 = scmp.lt.s32.totalorder %s71, 0
    %s73 = scalar_select %p72, %s71, 0
    %p74 = scmp.eq.s32.totalorder 0, 0
    // Predicated region
    $region14: #{tpu_custom_call.1} parent=1 // pred_check
      %p75 = pneg %p74
    $region15: #{tpu_custom_call.1} parent=1 // pred_check_branch
      %77 = sbr.rel (%p75) target = $region17
    $region16: #{tpu_custom_call.1} parent=1 // pred_region
      %vm78 = vcmask 7168
      %79 = vst.msk [vmem:[#allocation2] sm:$0xff] %vm78, 0.0
      %80 = vst.msk [vmem:[#allocation3] sm:$0xff] %vm78, -inf
    $region17: #{tpu_custom_call.1} parent=1 // pred_fallthru
      _
    %v81 = vld [vmem:[%s60] sm:$0xff]
    %v82 = vld [vmem:[%s70] sm:$0xff]
    %v83 = vld [vmem:[%s3] sm:$0x1]
    %vm84 = vcmask 130048
    %v85 = vsel %vm84, %v81, -inf
    %86 = vmax.xlane.f32.xlu0 %v85
    %v87 = vpop.xlane.xlu0 %86
    %v88 = vsub.f32 %v81, %v87
    %v89 = vmul.f32 %v88, 1.442695
    %v90 = vpow.pop %v89
    %v91 = vsel %vm84, %v90, 0.0
    %92 = vadd.xlane.f32.xlu0 %v91
    %v93 = vpop.xlane.xlu0 %92
    %v94 = vlog2.pop %v93
    %v95 = vmul.f32 %v94, 0.6931472
    %v96 = vadd.f32 %v87, %v95
    %v97 = vlaneseq
    %v98 = vand.u32 %v97, 127
    %99 = vset.pattern.permute.xlu0 0
    %100 = vperm.xlu0 %99, %v82
    %v101 = vpop.permute.xlu0 %100
    %vm102 = vcmp.eq.s32.totalorder %v98, %v101
    %v103 = vsel %vm102, %v81, 0.0
    %v104 = vsel %vm84, %v103, 0.0
    %105 = vadd.xlane.f32.xlu0 %v104
    %v106 = vpop.xlane.xlu0 %105
    %v108 = vlaneseq
    %v109 = vshrl.u32 %v108, 7
    %v110 = vsub.s32 0, %v109
    %v111 = vrot.slane %v83, %v110
    %v113 = vsel %vm102, %v111, 0.0
    %v114 = vsel %vm84, %v113, 0.0
    %115 = vadd.xlane.f32.xlu0 %v114
    %v116 = vpop.xlane.xlu0 %115
    %v117 = vsub.f32 0.0, %v116
    %v118 = vsub.f32 %v106, %v96
    %v119 = vmul.f32 %v117, %v118
    %v120 = vsub.f32 0.0, %v119
    %v121 = vmul.f32 %v120, 1.442695
    %v122 = vpow.pop %v121
    %v123 = vsub.f32 1.0, %v122
    %s124 = sadd.s32 0, 0
    %s125 = smul.u32 %s124, 8
    %v126 = vlaneseq
    %v127 = vshrl.u32 %v126, 7
    %v128 = vstv %s125
    %v129 = vadd.s32 %v128, %v127
    %s130 = sld [smem:[#allocation5]]
    %v131 = vstv %s130
    %vm132 = vcmp.lt.s32.totalorder %v129, %v131
    %v133 = vmul.f32 %v123, %v123
    %v134 = vld [vmem:[#allocation2] sm:$0xff]
    %v135 = vmul.f32 %v133, %v119
    %v136 = vsel %vm132, %v135, 0.0
    %v137 = vadd.f32 %v134, %v136
    %vm138 = vcmask 7168
    %139 = vst.msk [vmem:[#allocation2] sm:$0xff] %vm138, %v137
    %v140 = vld [vmem:[#allocation3] sm:$0xff]
    %v141 = vsel %vm132, %v123, -inf
    %v142 = vmax.f32 %v140, %v141
    %143 = vst.msk [vmem:[#allocation3] sm:$0xff] %vm138, %v142
    // Predicated region
    $region18: #{tpu_custom_call.1} parent=1 // pred_check
      %p144 = pneg %p74
    $region19: #{tpu_custom_call.1} parent=1 // pred_check_branch
      %146 = sbr.rel (%p144) target = $region21
    $region20: #{tpu_custom_call.1} parent=1 // pred_region
      %v147 = vld [vmem:[#allocation2] sm:$0xff]
      %v148 = vsel %vm138, %v147, 0.0
      %149 = vadd.xlane.f32.xlu0 %v148
      %v150 = vpop.xlane.xlu0 %149
      %v151 = vrot.slane %v150, 4
      %v152 = vadd.f32 %v150, %v151
      %v153 = vrot.slane %v152, 2
      %v154 = vadd.f32 %v152, %v153
      %v155 = vrot.slane %v154, 1
      %v156 = vadd.f32 %v154, %v155
      %s157 = vtos %v156
      %v158 = vstv %s157
      %vm159 = vcmask 0
      %160 = vst.msk [vmem:[#allocation6] sm:$0x1] %vm159, %v158
      %v161 = vld [vmem:[#allocation3] sm:$0xff]
      %v162 = vsel %vm138, %v161, -inf
      %163 = vmax.xlane.f32.xlu0 %v162
      %v164 = vpop.xlane.xlu0 %163
      %v165 = vrot.slane %v164, 4
      %v166 = vmax.f32 %v164, %v165
      %v167 = vrot.slane %v166, 2
      %v168 = vmax.f32 %v166, %v167
      %v169 = vrot.slane %v168, 1
      %v170 = vmax.f32 %v168, %v169
      %s171 = vtos %v170
      %v172 = vstv %s171
      %173 = vst.msk [vmem:[#allocation8] sm:$0x1] %vm159, %v172
    $region21: #{tpu_custom_call.1} parent=1 // pred_fallthru
      _
    // Predicated region
    $region22: #{tpu_custom_call.1} parent=1 // pred_check
      _
    $region23: #{tpu_custom_call.1} parent=1 // pred_check_branch
      %175 = sbr.rel (0) target = $region25
    $region24: #{tpu_custom_call.1} parent=1 // pred_region
      %s177 = ssub.s32 16, 16
      %178 = vsyncadd [#allocation7], %s177
      %s180 = sshll.u32 [#allocation6], 4
      %s181 = int_to_ptr.vmem [resolvable:$true] %s180
      %183 = dma.vmem_to_hbm [thread:$0]  %s181, 16, %s4, [#allocation7]
    $region25: #{tpu_custom_call.1} parent=1 // pred_fallthru
      _
    // Predicated region
    $region26: #{tpu_custom_call.1} parent=1 // pred_check
      _
    $region27: #{tpu_custom_call.1} parent=1 // pred_check_branch
      %185 = sbr.rel (0) target = $region29
    $region28: #{tpu_custom_call.1} parent=1 // pred_region
      %s187 = ssub.s32 16, 16
      %188 = vsyncadd [#allocation9], %s187
      %s190 = sshll.u32 [#allocation8], 4
      %s191 = int_to_ptr.vmem [resolvable:$true] %s190
      %193 = dma.vmem_to_hbm [thread:$0]  %s191, 16, %s5, [#allocation9]
    $region29: #{tpu_custom_call.1} parent=1 // pred_fallthru
      _
    // Predicated region
    $region30: #{tpu_custom_call.1} parent=1 // pred_check
      _
    $region31: #{tpu_custom_call.1} parent=1 // pred_check_branch
      %195 = sbr.rel (0) target = $region33
    $region32: #{tpu_custom_call.1} parent=1 // pred_region
      %196 = dma.done [#allocation7], 16
    $region33: #{tpu_custom_call.1} parent=1 // pred_fallthru
      _
    // Predicated region
    $region34: #{tpu_custom_call.1} parent=1 // pred_check
      _
    $region35: #{tpu_custom_call.1} parent=1 // pred_check_branch
      %198 = sbr.rel (0) target = $region37
    $region36: #{tpu_custom_call.1} parent=1 // pred_region
      %199 = dma.done [#allocation9], 16
    $region37: #{tpu_custom_call.1} parent=1 // pred_fallthru
      _
    %200 = vsyncpa [#allocation7], 1
    %201 = vsyncpa [#allocation9], 1

</llo_original>
